<compile_context>
chip_gen: v7x
topology: tpu7x:2x2x1
jax: 0.10.0
libtpu: 0.0.40
codegen_flags: <defaults>
</compile_context>

<pallas_src>
import numpy as np

import jax
import jax.numpy as jnp
from jax.experimental import pallas as pl
from jax.experimental.pallas import tpu as pltpu


def _vmem_budget(*buffer_bytes):
    """Footprint + headroom, capped at 40 MiB (safe on v7x's 64 MiB VMEM)."""
    need = sum(buffer_bytes)
    budget = max(need * 5 // 4, 16 * 1024 * 1024)
    return int(max(min(budget, 40 * 1024 * 1024), need))


# ---------------------------------------------------------------------------
# Projection: base = relu(X @ W + b)   (X, W streamed as bf16, f32 accumulate)
# ---------------------------------------------------------------------------
def _projection_kernel(feat_ref, w_ref, b_ref, out_ref):
    x = jnp.dot(feat_ref[...], w_ref[...], preferred_element_type=jnp.float32)
    x = jnp.maximum(x + b_ref[...], 0.0)          # (1, Cout) bias broadcasts
    out_ref[...] = x.astype(out_ref.dtype)


def _projection(features, weight, bias2d, *, tm, out_dtype):
    n, cin = features.shape
    cout = weight.shape[1]
    vmem_bytes = _vmem_budget(
        2 * tm * cin * features.dtype.itemsize,           # feature tiles (dbl-buf)
        2 * cin * cout * weight.dtype.itemsize,           # weight
        2 * cout * 4,                                     # bias
        2 * tm * cout * jnp.dtype(out_dtype).itemsize,    # output tiles
    )
    return pl.pallas_call(
        _projection_kernel,
        out_shape=jax.ShapeDtypeStruct((n, cout), out_dtype),
        grid=(n // tm,),
        in_specs=[
            pl.BlockSpec((tm, cin), lambda i: (i, 0)),
            pl.BlockSpec((cin, cout), lambda i: (0, 0)),
            pl.BlockSpec((1, cout), lambda i: (0, 0)),
        ],
        out_specs=pl.BlockSpec((tm, cout), lambda i: (i, 0)),
        compiler_params=pltpu.CompilerParams(
            dimension_semantics=("parallel",),
            vmem_limit_bytes=vmem_bytes,
        ),
    )(features, weight, bias2d)


# ---------------------------------------------------------------------------
# Block-sparse tile structure (computed once per forward, reused by all hops).
# Must run outside jit: max_nnz feeds the static grid extent.
# ---------------------------------------------------------------------------
def _pack_block_sparse(adj_bf16, tm, tk):
    n = adj_bf16.shape[0]
    n_i, n_k = n // tm, n // tk
    tiles = adj_bf16.reshape(n_i, tm, n_k, tk).transpose(0, 2, 1, 3)  # (n_i,n_k,tm,tk)

    nz = np.asarray(jax.device_get(jnp.any(tiles != 0, axis=(2, 3))))  # (n_i, n_k)
    counts = nz.sum(axis=1).astype(np.int32)                           # (n_i,)
    max_nnz = int(max(int(counts.max()) if counts.size else 0, 1))

    cols = np.zeros((n_i, max_nnz), dtype=np.int32)
    for i in range(n_i):
        ci = np.nonzero(nz[i])[0].astype(np.int32)
        c = int(counts[i])
        if c > 0:
            cols[i, :c] = ci
            cols[i, c:] = ci[-1]          # clamp tail -> DMA gets elided in-kernel

    # Gather the nonzero tiles into a compacted array: (n_i*max_nnz, tm, tk).
    packed = tiles[jnp.arange(n_i)[:, None], jnp.asarray(cols)]
    packed = packed.reshape(n_i * max_nnz, tm, tk)
    return packed, jnp.asarray(cols), jnp.asarray(counts), max_nnz


# ---------------------------------------------------------------------------
# One propagation hop: out = A_norm @ base
#   grid = (row tile i, nonzero-column slot s); base is VMEM-resident.
# ---------------------------------------------------------------------------
def _make_prop_kernel(tk, accumulate_into_out):
    def kernel(cols_ref, cnts_ref, adj_ref, base_ref, out_ref, *scratch):
        i = pl.program_id(0)
        s = pl.program_id(1)
        acc = out_ref if accumulate_into_out else scratch[0]

        @pl.when(s == 0)
        def _():
            acc[...] = jnp.zeros_like(acc)

        # Real (non-padded) slot: multiply this adjacency tile with the matching
        # column slab of the VMEM-resident base.
        @pl.when(s < cnts_ref[i])
        def _():
            col = cols_ref[i, s]
            start = pl.multiple_of(col * tk, tk)
            b_tile = base_ref[pl.ds(start, tk), :]
            acc[...] += jnp.dot(adj_ref[0], b_tile,
                                preferred_element_type=jnp.float32)

        if not accumulate_into_out:
            @pl.when(s == pl.num_programs(1) - 1)
            def _():
                out_ref[...] = acc[...].astype(out_ref.dtype)

    return kernel


def _propagation_hop(packed, cols, cnts, base, *, max_nnz, tm, tk, n, out_dtype):
    cout = base.shape[1]
    n_i = n // tm

    resident_bytes = n * cout * base.dtype.itemsize
    assert resident_bytes <= 24 * 1024 * 1024, (
        "VMEM-resident base exceeds budget; re-tile base over k for very large graphs")

    accumulate_into_out = jnp.dtype(out_dtype) == jnp.dtype(jnp.float32)
    kernel = _make_prop_kernel(tk, accumulate_into_out)

    def adj_map(i, s, cols_ref, cnts_ref):
        # Clamp padded tail slots to the last real tile: identical block index as
        # the previous step, so its DMA is skipped entirely.
        slot = jnp.minimum(s, jnp.maximum(cnts_ref[i] - 1, 0))
        return (i * max_nnz + slot, 0, 0)

    scratch_shapes = [] if accumulate_into_out else [pltpu.VMEM((tm, cout), jnp.float32)]

    vmem_bytes = _vmem_budget(
        2 * tm * tk * packed.dtype.itemsize,               # adjacency tiles (dbl-buf)
        2 * resident_bytes,                                # resident base (conservative)
        2 * tm * cout * jnp.dtype(out_dtype).itemsize,     # output tiles
        0 if accumulate_into_out else tm * cout * 4,       # f32 accumulator
    )

    # NOTE: on v7x, pltpu.CORE_PARALLEL on axis 0 (with n_i even) may be needed to
    # shard row tiles across the 2 TensorCores; "parallel" kept here for portability.
    return pl.pallas_call(
        kernel,
        out_shape=jax.ShapeDtypeStruct((n, cout), out_dtype),
        grid_spec=pltpu.PrefetchScalarGridSpec(
            num_scalar_prefetch=2,
            grid=(n_i, max_nnz),
            in_specs=[
                pl.BlockSpec((1, tm, tk), adj_map),
                # Full-array base, constant index_map -> DMA'd once, VMEM-resident.
                pl.BlockSpec((n, cout), lambda i, s, cols_r, cnts_r: (0, 0)),
            ],
            out_specs=pl.BlockSpec((tm, cout), lambda i, s, cols_r, cnts_r: (i, 0)),
            scratch_shapes=scratch_shapes,
        ),
        compiler_params=pltpu.CompilerParams(
            dimension_semantics=("parallel", "arbitrary"),
            vmem_limit_bytes=vmem_bytes,
        ),
    )(cols, cnts, packed, base)


# ---------------------------------------------------------------------------
# Full forward
# ---------------------------------------------------------------------------
def sparse_ngcn_forward(adj, features, weight, bias, *, iterations, tm=512, tk=512):
    n, cin = features.shape
    cout = weight.shape[1]
    assert adj.shape == (n, n)
    tm = min(tm, n)
    tk = min(tk, n)
    assert n % tm == 0 and n % tk == 0, "node count must divide the tile sizes"
    assert tm % 8 == 0 and tk % 128 == 0, "tiles must respect the (8,128) constraint"

    bias2d = bias.reshape(1, cout).astype(jnp.float32)

    # Intermediate base stays bf16 while it is streamed through the adjacency hops
    # (f32 accumulation inside the kernels); the final result is f32.
    inter_dtype = jnp.bfloat16 if iterations > 1 else jnp.float32
    tm_proj = 512 if (n % 512 == 0 and tm < 512) else tm
    base = _projection(features.astype(jnp.bfloat16), weight.astype(jnp.bfloat16),
                       bias2d, tm=tm_proj, out_dtype=inter_dtype)

    if iterations > 1:
        # Hoisted: cast once, pack the block-sparse structure once, reuse per hop.
        adj_bf16 = adj.astype(jnp.bfloat16)
        packed, cols, cnts, max_nnz = _pack_block_sparse(adj_bf16, tm, tk)

        for hop in range(iterations - 1):
            last = hop == iterations - 2
            base = _propagation_hop(
                packed, cols, cnts, base, max_nnz=max_nnz, tm=tm, tk=tk, n=n,
                out_dtype=jnp.float32 if last else jnp.bfloat16)
    return base


def reference_forward(adj, features, weight, bias, *, iterations):
    base = features @ weight + bias[None, :]
    base = jnp.maximum(base, 0.0)
    for _ in range(iterations - 1):
        base = adj @ base
    return base


if __name__ == "__main__":
    # Small, TPU-tile-friendly shapes consistent with the module's forward.
    N = 512            # number of graph nodes (4x4 grid of 128x128 tiles)
    IN_CHANNELS = 64
    OUT_CHANNELS = 128
    ITERATIONS = 3
    TM = TK = 128      # small demo tiles; wrapper defaults to 512 for real graphs
    DROPOUT_RATE = 0.5  # unused in eval mode

    key = jax.random.PRNGKey(0)
    k_feat, k_adj, k_w = jax.random.split(key, 3)

    # Node features.
    features = jax.random.normal(k_feat, (N, IN_CHANNELS), dtype=jnp.float32)

    # Synthetic normalized adjacency (dense; the torch module densifies sparse COO
    # input).  Block-banded structure: nonzero tiles on the diagonal and first
    # superdiagonal -> ragged per-row-tile tile counts, exercising the compacted
    # block-sparse gather and the clamped (DMA-elided) tail slots.
    raw = jax.random.uniform(k_adj, (N, N), dtype=jnp.float32)
    blk_i = jnp.arange(N)[:, None] // TM
    blk_j = jnp.arange(N)[None, :] // TK
    keep = (blk_j == blk_i) | (blk_j == blk_i + 1)
    adj = jnp.where((raw > 0.9) & keep, 1.0, 0.0) + jnp.eye(N, dtype=jnp.float32)
    adj = adj / jnp.sum(adj, axis=1, keepdims=True)   # row-normalized

    # Deterministic parameter init: xavier_uniform for W, zeros for bias.
    bound = (6.0 / (IN_CHANNELS + OUT_CHANNELS)) ** 0.5
    weight = jax.random.uniform(
        k_w, (IN_CHANNELS, OUT_CHANNELS), dtype=jnp.float32,
        minval=-bound, maxval=bound)
    bias = jnp.zeros((OUT_CHANNELS,), dtype=jnp.float32)

    out = sparse_ngcn_forward(adj, features, weight, bias,
                              iterations=ITERATIONS, tm=TM, tk=TK)
    out = jax.block_until_ready(out)

    ref = reference_forward(adj, features, weight, bias, iterations=ITERATIONS)
    assert out.shape == (N, OUT_CHANNELS)
    assert out.dtype == jnp.float32
    # bf16 streaming of adjacency / base / projection inputs compounds rounding
    # across hops -> relaxed tolerance vs the f32 reference.
    assert jnp.allclose(out, ref, atol=5e-2, rtol=5e-2), "mismatch vs reference"

    print("KERNEL_OK")
</pallas_src>

<mosaic_0001>
module attributes {stable_mosaic.version = 11 : i64} {
  func.func @_projection_kernel(%arg0: i32, %arg1: memref<512x64xbf16, #tpu.memory_space<vmem>>, %arg2: memref<64x128xbf16, #tpu.memory_space<vmem>>, %arg3: memref<1x128xf32, #tpu.memory_space<vmem>>, %arg4: memref<512x128xbf16, #tpu.memory_space<vmem>>) attributes {dimension_semantics = [#tpu.dimension_semantics<parallel>], iteration_bounds = array<i64: 1>, scalar_prefetch = 0 : i64, scratch_operands = 0 : i64, tpu.core_type = #tpu.core_type<tc>, window_params = [{transform_indices = @transform_0, window_bounds = array<i64: 512, 64>}, {pipeline_mode = #tpu.pipeline_mode<synchronous>, transform_indices = @transform_1, window_bounds = array<i64: 64, 128>}, {pipeline_mode = #tpu.pipeline_mode<synchronous>, transform_indices = @transform_2, window_bounds = array<i64: 1, 128>}, {transform_indices = @transform_3, window_bounds = array<i64: 512, 128>}]} {
    %c0 = arith.constant 0 : index
    %c0_0 = arith.constant 0 : index
    %0 = vector.load %arg1[%c0, %c0_0] : memref<512x64xbf16, #tpu.memory_space<vmem>>, vector<512x64xbf16>
    %c0_1 = arith.constant 0 : index
    %c0_2 = arith.constant 0 : index
    %1 = vector.load %arg2[%c0_1, %c0_2] : memref<64x128xbf16, #tpu.memory_space<vmem>>, vector<64x128xbf16>
    %cst = arith.constant dense<0.000000e+00> : vector<512x128xf32>
    %2 = tpu.matmul %0, %1, %cst {dimension_numbers = #tpu.dot_dimension_numbers<[1], [0], [0], [1], [0, 0, 1, 1], [], []>} : vector<512x64xbf16>, vector<64x128xbf16>, vector<512x128xf32> -> vector<512x128xf32>
    %c0_3 = arith.constant 0 : index
    %c0_4 = arith.constant 0 : index
    %3 = vector.load %arg3[%c0_3, %c0_4] : memref<1x128xf32, #tpu.memory_space<vmem>>, vector<1x128xf32>
    %4 = vector.broadcast %3 : vector<1x128xf32> to vector<512x128xf32>
    %5 = arith.addf %2, %4 : vector<512x128xf32>
    %cst_5 = arith.constant 0.000000e+00 : f32
    %6 = vector.broadcast %cst_5 : f32 to vector<512x128xf32>
    %7 = arith.maximumf %5, %6 : vector<512x128xf32>
    %8 = arith.truncf %7 : vector<512x128xf32> to vector<512x128xbf16>
    %c0_6 = arith.constant 0 : index
    %c0_7 = arith.constant 0 : index
    %9 = vector.load %arg4[%c0_6, %c0_7] : memref<512x128xbf16, #tpu.memory_space<vmem>>, vector<512x128xbf16>
    tpu.vector_store %arg4[%c0_6, %c0_7], %8 {strides = array<i32>} : memref<512x128xbf16, #tpu.memory_space<vmem>>, vector<512x128xbf16>,
    return
  }
  func.func @transform_0(%arg0: i32) -> (i32, i32) {
    %c0_i32 = arith.constant 0 : i32
    %c0_i32_0 = arith.constant 0 : i32
    return %arg0, %c0_i32 : i32, i32
  }
  func.func @transform_1(%arg0: i32) -> (i32, i32) {
    %c0_i32 = arith.constant 0 : i32
    %c0_i32_0 = arith.constant 0 : i32
    %c0_i32_1 = arith.constant 0 : i32
    return %c0_i32, %c0_i32_0 : i32, i32
  }
  func.func @transform_2(%arg0: i32) -> (i32, i32) {
    %c0_i32 = arith.constant 0 : i32
    %c0_i32_0 = arith.constant 0 : i32
    %c0_i32_1 = arith.constant 0 : i32
    return %c0_i32, %c0_i32_0 : i32, i32
  }
  func.func @transform_3(%arg0: i32) -> (i32, i32) {
    %c0_i32 = arith.constant 0 : i32
    %c0_i32_0 = arith.constant 0 : i32
    return %arg0, %c0_i32 : i32, i32
  }
}

</mosaic_0001>

<llo_original>
// kernel: tpu_custom_call.1
$region0: #{tpu_custom_call.1}
  #allocation0 [shape = 'u32[]', space=smem, size = 0x4, offset = 0x4, fixed_abs, tag = 'smem constant byte address 0x4 - core index']
  #allocation1 [shape = 'u32[144,128]{1,0:T(1,128)}', space=vmem, size = 0x12000, scoped, tag = 'internal scratch']
  %s0 = inlined_call_operand.vmem [shape: bf16[512,64], index: 0, kind: input, shape index: {}]
  %s1 = inlined_call_operand.vmem [shape: bf16[64,128], index: 1, kind: input, shape index: {}]
  %s2 = inlined_call_operand.vmem [shape: f32[1,128], index: 2, kind: input, shape index: {}]
  %s3 = inlined_call_operand.hbm [shape: bf16[512,128], index: 3, kind: output, shape index: {}]
  %s4 = sld [smem:[#allocation0]]
  $region22: #{tpu_custom_call.1} parent=0
    _
  %s6 = ssub.s32 1, %s4
  %s7 = scalar_select 0, %s6, %s4
  $region1: #{tpu_custom_call.1} parent=0
    #allocation2 [shape = 'u8[131072]{0}', space=vmem, size = 0x20000, scoped, tag = 'output window, operand 0, single buffered']
    #allocation3 [shape = 's32[1]{0}', space=sflag, size = 0x4, scoped, tag = 'scoped memory for tpu_custom_call.1']
    %8 = vsyncpa [#allocation3], 0
    // Predicated region
    $region2: #{tpu_custom_call.1} parent=1 // pred_check
      _
    $region3: #{tpu_custom_call.1} parent=1 // pred_check_branch
      %10 = sbr.rel (0) target = $region5
    $region4: #{tpu_custom_call.1} parent=1 // pred_region
      _
    $region5: #{tpu_custom_call.1} parent=1 // pred_fallthru
      _
    // Predicated region
    $region6: #{tpu_custom_call.1} parent=1 // pred_check
      _
    $region7: #{tpu_custom_call.1} parent=1 // pred_check_branch
      %12 = sbr.rel (0) target = $region9
    $region8: #{tpu_custom_call.1} parent=1 // pred_region
      _
    $region9: #{tpu_custom_call.1} parent=1 // pred_fallthru
      _
    // Predicated region
    $region10: #{tpu_custom_call.1} parent=1 // pred_check
      _
    $region11: #{tpu_custom_call.1} parent=1 // pred_check_branch
      %14 = sbr.rel (0) target = $region13
    $region12: #{tpu_custom_call.1} parent=1 // pred_region
      _
    $region13: #{tpu_custom_call.1} parent=1 // pred_fallthru
      _
    %v16 = vld [vmem:[%s0] sm:$0xf]
    %v17 = vld [vmem:[%s0 + $0x4] sm:$0xf]
    %v18 = vld [vmem:[%s0 + $0x8] sm:$0xf]
    %v19 = vld [vmem:[%s0 + $0xc] sm:$0xf]
    %v20 = vld [vmem:[%s0 + $0x10] sm:$0xf]
    %v21 = vld [vmem:[%s0 + $0x14] sm:$0xf]
    %v22 = vld [vmem:[%s0 + $0x18] sm:$0xf]
    %v23 = vld [vmem:[%s0 + $0x1c] sm:$0xf]
    %v24 = vld [vmem:[%s0 + $0x20] sm:$0xf]
    %v25 = vld [vmem:[%s0 + $0x24] sm:$0xf]
    %v26 = vld [vmem:[%s0 + $0x28] sm:$0xf]
    %v27 = vld [vmem:[%s0 + $0x2c] sm:$0xf]
    %v28 = vld [vmem:[%s0 + $0x30] sm:$0xf]
    %v29 = vld [vmem:[%s0 + $0x34] sm:$0xf]
    %v30 = vld [vmem:[%s0 + $0x38] sm:$0xf]
    %v31 = vld [vmem:[%s0 + $0x3c] sm:$0xf]
    %v32 = vld [vmem:[%s0 + $0x40] sm:$0xf]
    %v33 = vld [vmem:[%s0 + $0x44] sm:$0xf]
    %v34 = vld [vmem:[%s0 + $0x48] sm:$0xf]
    %v35 = vld [vmem:[%s0 + $0x4c] sm:$0xf]
    %v36 = vld [vmem:[%s0 + $0x50] sm:$0xf]
    %v37 = vld [vmem:[%s0 + $0x54] sm:$0xf]
    %v38 = vld [vmem:[%s0 + $0x58] sm:$0xf]
    %v39 = vld [vmem:[%s0 + $0x5c] sm:$0xf]
    %v40 = vld [vmem:[%s0 + $0x60] sm:$0xf]
    %v41 = vld [vmem:[%s0 + $0x64] sm:$0xf]
    %v42 = vld [vmem:[%s0 + $0x68] sm:$0xf]
    %v43 = vld [vmem:[%s0 + $0x6c] sm:$0xf]
    %v44 = vld [vmem:[%s0 + $0x70] sm:$0xf]
    %v45 = vld [vmem:[%s0 + $0x74] sm:$0xf]
    %v46 = vld [vmem:[%s0 + $0x78] sm:$0xf]
    %v47 = vld [vmem:[%s0 + $0x7c] sm:$0xf]
    %v48 = vld [vmem:[%s0 + $0x80] sm:$0xf]
    %v49 = vld [vmem:[%s0 + $0x84] sm:$0xf]
    %v50 = vld [vmem:[%s0 + $0x88] sm:$0xf]
    %v51 = vld [vmem:[%s0 + $0x8c] sm:$0xf]
    %v52 = vld [vmem:[%s0 + $0x90] sm:$0xf]
    %v53 = vld [vmem:[%s0 + $0x94] sm:$0xf]
    %v54 = vld [vmem:[%s0 + $0x98] sm:$0xf]
    %v55 = vld [vmem:[%s0 + $0x9c] sm:$0xf]
    %v56 = vld [vmem:[%s0 + $0xa0] sm:$0xf]
    %v57 = vld [vmem:[%s0 + $0xa4] sm:$0xf]
    %v58 = vld [vmem:[%s0 + $0xa8] sm:$0xf]
    %v59 = vld [vmem:[%s0 + $0xac] sm:$0xf]
    %v60 = vld [vmem:[%s0 + $0xb0] sm:$0xf]
    %v61 = vld [vmem:[%s0 + $0xb4] sm:$0xf]
    %v62 = vld [vmem:[%s0 + $0xb8] sm:$0xf]
    %v63 = vld [vmem:[%s0 + $0xbc] sm:$0xf]
    %v64 = vld [vmem:[%s0 + $0xc0] sm:$0xf]
    %v65 = vld [vmem:[%s0 + $0xc4] sm:$0xf]
    %v66 = vld [vmem:[%s0 + $0xc8] sm:$0xf]
    %v67 = vld [vmem:[%s0 + $0xcc] sm:$0xf]
    %v68 = vld [vmem:[%s0 + $0xd0] sm:$0xf]
    %v69 = vld [vmem:[%s0 + $0xd4] sm:$0xf]
    %v70 = vld [vmem:[%s0 + $0xd8] sm:$0xf]
    %v71 = vld [vmem:[%s0 + $0xdc] sm:$0xf]
    %v72 = vld [vmem:[%s0 + $0xe0] sm:$0xf]
    %v73 = vld [vmem:[%s0 + $0xe4] sm:$0xf]
    %v74 = vld [vmem:[%s0 + $0xe8] sm:$0xf]
    %v75 = vld [vmem:[%s0 + $0xec] sm:$0xf]
    %v76 = vld [vmem:[%s0 + $0xf0] sm:$0xf]
    %v77 = vld [vmem:[%s0 + $0xf4] sm:$0xf]
    %v78 = vld [vmem:[%s0 + $0xf8] sm:$0xf]
    %v79 = vld [vmem:[%s0 + $0xfc] sm:$0xf]
    %v80 = vld [vmem:[%s1] sm:$0xf]
    %v81 = vld [vmem:[%s1 + $0x4] sm:$0xf]
    %v82 = vld [vmem:[%s1 + $0x8] sm:$0xf]
    %v83 = vld [vmem:[%s1 + $0xc] sm:$0xf]
    %v84 = vld [vmem:[%s1 + $0x10] sm:$0xf]
    %v85 = vld [vmem:[%s1 + $0x14] sm:$0xf]
    %v86 = vld [vmem:[%s1 + $0x18] sm:$0xf]
    %v87 = vld [vmem:[%s1 + $0x1c] sm:$0xf]
    %v88 = vld [vmem:[%s2] sm:$0x1]
    %v90 = vlaneseq
    %v91 = vshrl.u32 %v90, 7
    %v92 = vsub.s32 0, %v91
    %v93 = vrot.slane %v88, %v92
    %v159 = vunpack.c.l.b16 %v16
    %v160 = vunpack.c.l.b16 %v17
    %v161 = vunpack.c.l.b16 %v18
    %v162 = vunpack.c.l.b16 %v19
    %v163 = vunpack.c.l.b16 %v20
    %v164 = vunpack.c.l.b16 %v21
    %v165 = vunpack.c.l.b16 %v22
    %v166 = vunpack.c.l.b16 %v23
    %v167 = vunpack.c.l.b16 %v24
    %v168 = vunpack.c.l.b16 %v25
    %v169 = vunpack.c.l.b16 %v26
    %v170 = vunpack.c.l.b16 %v27
    %v171 = vunpack.c.l.b16 %v28
    %v172 = vunpack.c.l.b16 %v29
    %v173 = vunpack.c.l.b16 %v30
    %v174 = vunpack.c.l.b16 %v31
    %v175 = vunpack.c.l.b16 %v32
    %v176 = vunpack.c.l.b16 %v33
    %v177 = vunpack.c.l.b16 %v34
    %v178 = vunpack.c.l.b16 %v35
    %v179 = vunpack.c.l.b16 %v36
    %v180 = vunpack.c.l.b16 %v37
    %v181 = vunpack.c.l.b16 %v38
    %v182 = vunpack.c.l.b16 %v39
    %v183 = vunpack.c.l.b16 %v40
    %v184 = vunpack.c.l.b16 %v41
    %v185 = vunpack.c.l.b16 %v42
    %v186 = vunpack.c.l.b16 %v43
    %v187 = vunpack.c.l.b16 %v44
    %v188 = vunpack.c.l.b16 %v45
    %v189 = vunpack.c.l.b16 %v46
    %v190 = vunpack.c.l.b16 %v47
    %v191 = vunpack.c.l.b16 %v48
    %v192 = vunpack.c.l.b16 %v49
    %v193 = vunpack.c.l.b16 %v50
    %v194 = vunpack.c.l.b16 %v51
    %v195 = vunpack.c.l.b16 %v52
    %v196 = vunpack.c.l.b16 %v53
    %v197 = vunpack.c.l.b16 %v54
    %v198 = vunpack.c.l.b16 %v55
    %v199 = vunpack.c.l.b16 %v56
    %v200 = vunpack.c.l.b16 %v57
    %v201 = vunpack.c.l.b16 %v58
    %v202 = vunpack.c.l.b16 %v59
    %v203 = vunpack.c.l.b16 %v60
    %v204 = vunpack.c.l.b16 %v61
    %v205 = vunpack.c.l.b16 %v62
    %v206 = vunpack.c.l.b16 %v63
    %v207 = vunpack.c.l.b16 %v64
    %v208 = vunpack.c.l.b16 %v65
    %v209 = vunpack.c.l.b16 %v66
    %v210 = vunpack.c.l.b16 %v67
    %v211 = vunpack.c.l.b16 %v68
    %v212 = vunpack.c.l.b16 %v69
    %v213 = vunpack.c.l.b16 %v70
    %v214 = vunpack.c.l.b16 %v71
    %v215 = vunpack.c.l.b16 %v72
    %v216 = vunpack.c.l.b16 %v73
    %v217 = vunpack.c.l.b16 %v74
    %v218 = vunpack.c.l.b16 %v75
    %v219 = vunpack.c.l.b16 %v76
    %v220 = vunpack.c.l.b16 %v77
    %v221 = vunpack.c.l.b16 %v78
    %v222 = vunpack.c.l.b16 %v79
    %v223 = vpack.c.b16 %v160, %v159
    %v224 = vpack.c.b16 %v162, %v161
    %v225 = vpack.c.b16 %v164, %v163
    %v226 = vpack.c.b16 %v166, %v165
    %v227 = vpack.c.b16 %v168, %v167
    %v228 = vpack.c.b16 %v170, %v169
    %v229 = vpack.c.b16 %v172, %v171
    %v230 = vpack.c.b16 %v174, %v173
    %v231 = vpack.c.b16 %v176, %v175
    %v232 = vpack.c.b16 %v178, %v177
    %v233 = vpack.c.b16 %v180, %v179
    %v234 = vpack.c.b16 %v182, %v181
    %v235 = vpack.c.b16 %v184, %v183
    %v236 = vpack.c.b16 %v186, %v185
    %v237 = vpack.c.b16 %v188, %v187
    %v238 = vpack.c.b16 %v190, %v189
    %v239 = vpack.c.b16 %v192, %v191
    %v240 = vpack.c.b16 %v194, %v193
    %v241 = vpack.c.b16 %v196, %v195
    %v242 = vpack.c.b16 %v198, %v197
    %v243 = vpack.c.b16 %v200, %v199
    %v244 = vpack.c.b16 %v202, %v201
    %v245 = vpack.c.b16 %v204, %v203
    %v246 = vpack.c.b16 %v206, %v205
    %v247 = vpack.c.b16 %v208, %v207
    %v248 = vpack.c.b16 %v210, %v209
    %v249 = vpack.c.b16 %v212, %v211
    %v250 = vpack.c.b16 %v214, %v213
    %v251 = vpack.c.b16 %v216, %v215
    %v252 = vpack.c.b16 %v218, %v217
    %v253 = vpack.c.b16 %v220, %v219
    %v254 = vpack.c.b16 %v222, %v221
    %v263 = vunpack.c.l.b16 %v80
    %v264 = vunpack.c.l.b16 %v81
    %v265 = vunpack.c.l.b16 %v82
    %v266 = vunpack.c.l.b16 %v83
    %v267 = vunpack.c.l.b16 %v84
    %v268 = vunpack.c.l.b16 %v85
    %v269 = vunpack.c.l.b16 %v86
    %v270 = vunpack.c.l.b16 %v87
    %v271 = vpack.c.b16 %v264, %v263
    %v272 = vpack.c.b16 %v266, %v265
    %v273 = vpack.c.b16 %v268, %v267
    %v274 = vpack.c.b16 %v270, %v269
    %vm279 = vcmask 523264
    %v281 = vsel %vm279, %v223, 0
    %v284 = vsel %vm279, %v224, 0
    %v287 = vsel %vm279, %v225, 0
    %v290 = vsel %vm279, %v226, 0
    %v293 = vsel %vm279, %v227, 0
    %v296 = vsel %vm279, %v228, 0
    %v299 = vsel %vm279, %v229, 0
    %v302 = vsel %vm279, %v230, 0
    %v305 = vsel %vm279, %v231, 0
    %v308 = vsel %vm279, %v232, 0
    %v311 = vsel %vm279, %v233, 0
    %v314 = vsel %vm279, %v234, 0
    %v317 = vsel %vm279, %v235, 0
    %v320 = vsel %vm279, %v236, 0
    %v323 = vsel %vm279, %v237, 0
    %v326 = vsel %vm279, %v238, 0
    %v329 = vsel %vm279, %v239, 0
    %v332 = vsel %vm279, %v240, 0
    %v335 = vsel %vm279, %v241, 0
    %v338 = vsel %vm279, %v242, 0
    %v341 = vsel %vm279, %v243, 0
    %v344 = vsel %vm279, %v244, 0
    %v347 = vsel %vm279, %v245, 0
    %v350 = vsel %vm279, %v246, 0
    %v353 = vsel %vm279, %v247, 0
    %v356 = vsel %vm279, %v248, 0
    %v359 = vsel %vm279, %v249, 0
    %v362 = vsel %vm279, %v250, 0
    %v365 = vsel %vm279, %v251, 0
    %v368 = vsel %vm279, %v252, 0
    %v371 = vsel %vm279, %v253, 0
    %v374 = vsel %vm279, %v254, 0
    %376 = vmatprep.subr.bf16.mxu0 0
    %377 = vmatpush1.bf16.msra.mxu0 %v271
    %378 = vmatprep.subr.bf16.mxu0 0
    %379 = vmatpush1.bf16.msra.mxu0 %v272
    %380 = vmatprep.subr.bf16.mxu0 0
    %381 = vmatpush1.bf16.msra.mxu0 %v273
    %382 = vmatprep.subr.bf16.mxu0 0
    %383 = vmatpush1.bf16.msra.mxu0 %v274
    %384 = vmatprep.subr.bf16.mxu0 0
    %385 = vmatpush1.bf16.msra.mxu0 0
    %386 = vmatprep.subr.bf16.mxu0 0
    %387 = vmatpush1.bf16.msra.mxu0 0
    %388 = vmatprep.subr.bf16.mxu0 0
    %389 = vmatpush1.bf16.msra.mxu0 0
    %390 = vmatprep.subr.bf16.mxu0 0
    %391 = vmatpush1.bf16.msra.mxu0 0
    %392 = vmatprep.subr.bf16.mxu0 0
    %393 = vmatpush1.bf16.msra.mxu0 0
    %394 = vmatprep.subr.bf16.mxu0 0
    %395 = vmatpush1.bf16.msra.mxu0 0
    %396 = vmatprep.subr.bf16.mxu0 0
    %397 = vmatpush1.bf16.msra.mxu0 0
    %398 = vmatprep.subr.bf16.mxu0 0
    %399 = vmatpush1.bf16.msra.mxu0 0
    %400 = vmatprep.subr.bf16.mxu0 0
    %401 = vmatpush1.bf16.msra.mxu0 0
    %402 = vmatprep.subr.bf16.mxu0 0
    %403 = vmatpush1.bf16.msra.mxu0 0
    %404 = vmatprep.subr.bf16.mxu0 0
    %405 = vmatpush1.bf16.msra.mxu0 0
    %406 = vmatprep.subr.bf16.mxu0 0
    %407 = vmatpush1.bf16.msra.mxu0 0
    %408 = vmatprep.mubr.bf16.mxu0 0
    %409 = vmatmul.mubr.bf16.gmra.mrb[0].mxu0 %v281
    %v410 = vpop.f32.mrb[0].mxu0
    %v411 = vadd.f32 %v93, %v410
    %v412 = vpop.f32.mrb[0].mxu0
    %v413 = vpop.f32.mrb[0].mxu0
    %v414 = vadd.f32 %v93, %v413
    %v415 = vpop.f32.mrb[0].mxu0
    %416 = vmatprep.mubr.bf16.mxu0 0
    %417 = vmatmul.mubr.bf16.gmra.mrb[0].mxu0 %v284
    %v418 = vpop.f32.mrb[0].mxu0
    %v419 = vadd.f32 %v93, %v418
    %v420 = vpop.f32.mrb[0].mxu0
    %v421 = vpop.f32.mrb[0].mxu0
    %v422 = vadd.f32 %v93, %v421
    %v423 = vpop.f32.mrb[0].mxu0
    %424 = vmatprep.mubr.bf16.mxu0 0
    %425 = vmatmul.mubr.bf16.gmra.mrb[0].mxu0 %v287
    %v426 = vpop.f32.mrb[0].mxu0
    %v427 = vadd.f32 %v93, %v426
    %v428 = vpop.f32.mrb[0].mxu0
    %v429 = vpop.f32.mrb[0].mxu0
    %v430 = vadd.f32 %v93, %v429
    %v431 = vpop.f32.mrb[0].mxu0
    %432 = vmatprep.mubr.bf16.mxu0 0
    %433 = vmatmul.mubr.bf16.gmra.mrb[0].mxu0 %v290
    %v434 = vpop.f32.mrb[0].mxu0
    %v435 = vadd.f32 %v93, %v434
    %v436 = vpop.f32.mrb[0].mxu0
    %v437 = vpop.f32.mrb[0].mxu0
    %v438 = vadd.f32 %v93, %v437
    %v439 = vpop.f32.mrb[0].mxu0
    %440 = vmatprep.mubr.bf16.mxu0 0
    %441 = vmatmul.mubr.bf16.gmra.mrb[0].mxu0 %v293
    %v442 = vpop.f32.mrb[0].mxu0
    %v443 = vadd.f32 %v93, %v442
    %v444 = vpop.f32.mrb[0].mxu0
    %v445 = vpop.f32.mrb[0].mxu0
    %v446 = vadd.f32 %v93, %v445
    %v447 = vpop.f32.mrb[0].mxu0
    %448 = vmatprep.mubr.bf16.mxu0 0
    %449 = vmatmul.mubr.bf16.gmra.mrb[0].mxu0 %v296
    %v450 = vpop.f32.mrb[0].mxu0
    %v451 = vadd.f32 %v93, %v450
    %v452 = vpop.f32.mrb[0].mxu0
    %v453 = vpop.f32.mrb[0].mxu0
    %v454 = vadd.f32 %v93, %v453
    %v455 = vpop.f32.mrb[0].mxu0
    %456 = vmatprep.mubr.bf16.mxu0 0
    %457 = vmatmul.mubr.bf16.gmra.mrb[0].mxu0 %v299
    %v458 = vpop.f32.mrb[0].mxu0
    %v459 = vadd.f32 %v93, %v458
    %v460 = vpop.f32.mrb[0].mxu0
    %v461 = vpop.f32.mrb[0].mxu0
    %v462 = vadd.f32 %v93, %v461
    %v463 = vpop.f32.mrb[0].mxu0
    %464 = vmatprep.mubr.bf16.mxu0 0
    %465 = vmatmul.mubr.bf16.gmra.mrb[0].mxu0 %v302
    %v466 = vpop.f32.mrb[0].mxu0
    %v467 = vadd.f32 %v93, %v466
    %v468 = vpop.f32.mrb[0].mxu0
    %v469 = vpop.f32.mrb[0].mxu0
    %v470 = vadd.f32 %v93, %v469
    %v471 = vpop.f32.mrb[0].mxu0
    %472 = vmatprep.mubr.bf16.mxu0 0
    %473 = vmatmul.mubr.bf16.gmra.mrb[0].mxu0 %v305
    %v474 = vpop.f32.mrb[0].mxu0
    %v475 = vadd.f32 %v93, %v474
    %v476 = vpop.f32.mrb[0].mxu0
    %v477 = vpop.f32.mrb[0].mxu0
    %v478 = vadd.f32 %v93, %v477
    %v479 = vpop.f32.mrb[0].mxu0
    %480 = vmatprep.mubr.bf16.mxu0 0
    %481 = vmatmul.mubr.bf16.gmra.mrb[0].mxu0 %v308
    %v482 = vpop.f32.mrb[0].mxu0
    %v483 = vadd.f32 %v93, %v482
    %v484 = vpop.f32.mrb[0].mxu0
    %v485 = vpop.f32.mrb[0].mxu0
    %v486 = vadd.f32 %v93, %v485
    %v487 = vpop.f32.mrb[0].mxu0
    %488 = vmatprep.mubr.bf16.mxu0 0
    %489 = vmatmul.mubr.bf16.gmra.mrb[0].mxu0 %v311
    %v490 = vpop.f32.mrb[0].mxu0
    %v491 = vadd.f32 %v93, %v490
    %v492 = vpop.f32.mrb[0].mxu0
    %v493 = vpop.f32.mrb[0].mxu0
    %v494 = vadd.f32 %v93, %v493
    %v495 = vpop.f32.mrb[0].mxu0
    %496 = vmatprep.mubr.bf16.mxu0 0
    %497 = vmatmul.mubr.bf16.gmra.mrb[0].mxu0 %v314
    %v498 = vpop.f32.mrb[0].mxu0
    %v499 = vadd.f32 %v93, %v498
    %v500 = vpop.f32.mrb[0].mxu0
    %v501 = vpop.f32.mrb[0].mxu0
    %v502 = vadd.f32 %v93, %v501
    %v503 = vpop.f32.mrb[0].mxu0
    %504 = vmatprep.mubr.bf16.mxu0 0
    %505 = vmatmul.mubr.bf16.gmra.mrb[0].mxu0 %v317
    %v506 = vpop.f32.mrb[0].mxu0
    %v507 = vadd.f32 %v93, %v506
    %v508 = vpop.f32.mrb[0].mxu0
    %v509 = vpop.f32.mrb[0].mxu0
    %v510 = vadd.f32 %v93, %v509
    %v511 = vpop.f32.mrb[0].mxu0
    %512 = vmatprep.mubr.bf16.mxu0 0
    %513 = vmatmul.mubr.bf16.gmra.mrb[0].mxu0 %v320
    %v514 = vpop.f32.mrb[0].mxu0
    %v515 = vadd.f32 %v93, %v514
    %v516 = vpop.f32.mrb[0].mxu0
    %v517 = vpop.f32.mrb[0].mxu0
    %v518 = vadd.f32 %v93, %v517
    %v519 = vpop.f32.mrb[0].mxu0
    %520 = vmatprep.mubr.bf16.mxu0 0
    %521 = vmatmul.mubr.bf16.gmra.mrb[0].mxu0 %v323
    %v522 = vpop.f32.mrb[0].mxu0
    %v523 = vadd.f32 %v93, %v522
    %v524 = vpop.f32.mrb[0].mxu0
    %v525 = vpop.f32.mrb[0].mxu0
    %v526 = vadd.f32 %v93, %v525
    %v527 = vpop.f32.mrb[0].mxu0
    %528 = vmatprep.mubr.bf16.mxu0 0
    %529 = vmatmul.mubr.bf16.gmra.mrb[0].mxu0 %v326
    %v530 = vpop.f32.mrb[0].mxu0
    %v531 = vadd.f32 %v93, %v530
    %v532 = vpop.f32.mrb[0].mxu0
    %v533 = vpop.f32.mrb[0].mxu0
    %v534 = vadd.f32 %v93, %v533
    %v535 = vpop.f32.mrb[0].mxu0
    %536 = vmatprep.mubr.bf16.mxu0 0
    %537 = vmatmul.mubr.bf16.gmra.mrb[0].mxu0 %v329
    %v538 = vpop.f32.mrb[0].mxu0
    %v539 = vadd.f32 %v93, %v538
    %v540 = vpop.f32.mrb[0].mxu0
    %v541 = vpop.f32.mrb[0].mxu0
    %v542 = vadd.f32 %v93, %v541
    %v543 = vpop.f32.mrb[0].mxu0
    %544 = vmatprep.mubr.bf16.mxu0 0
    %545 = vmatmul.mubr.bf16.gmra.mrb[0].mxu0 %v332
    %v546 = vpop.f32.mrb[0].mxu0
    %v547 = vadd.f32 %v93, %v546
    %v548 = vpop.f32.mrb[0].mxu0
    %v549 = vpop.f32.mrb[0].mxu0
    %v550 = vadd.f32 %v93, %v549
    %v551 = vpop.f32.mrb[0].mxu0
    %552 = vmatprep.mubr.bf16.mxu0 0
    %553 = vmatmul.mubr.bf16.gmra.mrb[0].mxu0 %v335
    %v554 = vpop.f32.mrb[0].mxu0
    %v555 = vadd.f32 %v93, %v554
    %v556 = vpop.f32.mrb[0].mxu0
    %v557 = vpop.f32.mrb[0].mxu0
    %v558 = vadd.f32 %v93, %v557
    %v559 = vpop.f32.mrb[0].mxu0
    %560 = vmatprep.mubr.bf16.mxu0 0
    %561 = vmatmul.mubr.bf16.gmra.mrb[0].mxu0 %v338
    %v562 = vpop.f32.mrb[0].mxu0
    %v563 = vadd.f32 %v93, %v562
    %v564 = vpop.f32.mrb[0].mxu0
    %v565 = vpop.f32.mrb[0].mxu0
    %v566 = vadd.f32 %v93, %v565
    %v567 = vpop.f32.mrb[0].mxu0
    %568 = vmatprep.mubr.bf16.mxu0 0
    %569 = vmatmul.mubr.bf16.gmra.mrb[0].mxu0 %v341
    %v570 = vpop.f32.mrb[0].mxu0
    %v571 = vadd.f32 %v93, %v570
    %v572 = vpop.f32.mrb[0].mxu0
    %v573 = vpop.f32.mrb[0].mxu0
    %v574 = vadd.f32 %v93, %v573
    %v575 = vpop.f32.mrb[0].mxu0
    %576 = vmatprep.mubr.bf16.mxu0 0
    %577 = vmatmul.mubr.bf16.gmra.mrb[0].mxu0 %v344
    %v578 = vpop.f32.mrb[0].mxu0
    %v579 = vadd.f32 %v93, %v578
    %v580 = vpop.f32.mrb[0].mxu0
    %v581 = vpop.f32.mrb[0].mxu0
    %v582 = vadd.f32 %v93, %v581
    %v583 = vpop.f32.mrb[0].mxu0
    %584 = vmatprep.mubr.bf16.mxu0 0
    %585 = vmatmul.mubr.bf16.gmra.mrb[0].mxu0 %v347
    %v586 = vpop.f32.mrb[0].mxu0
    %v587 = vadd.f32 %v93, %v586
    %v588 = vpop.f32.mrb[0].mxu0
    %v589 = vpop.f32.mrb[0].mxu0
    %v590 = vadd.f32 %v93, %v589
    %v591 = vpop.f32.mrb[0].mxu0
    %592 = vmatprep.mubr.bf16.mxu0 0
    %593 = vmatmul.mubr.bf16.gmra.mrb[0].mxu0 %v350
    %v594 = vpop.f32.mrb[0].mxu0
    %v595 = vadd.f32 %v93, %v594
    %v596 = vpop.f32.mrb[0].mxu0
    %v597 = vpop.f32.mrb[0].mxu0
    %v598 = vadd.f32 %v93, %v597
    %v599 = vpop.f32.mrb[0].mxu0
    %600 = vmatprep.mubr.bf16.mxu0 0
    %601 = vmatmul.mubr.bf16.gmra.mrb[0].mxu0 %v353
    %v602 = vpop.f32.mrb[0].mxu0
    %v603 = vadd.f32 %v93, %v602
    %v604 = vpop.f32.mrb[0].mxu0
    %v605 = vpop.f32.mrb[0].mxu0
    %v606 = vadd.f32 %v93, %v605
    %v607 = vpop.f32.mrb[0].mxu0
    %608 = vmatprep.mubr.bf16.mxu0 0
    %609 = vmatmul.mubr.bf16.gmra.mrb[0].mxu0 %v356
    %v610 = vpop.f32.mrb[0].mxu0
    %v611 = vadd.f32 %v93, %v610
    %v612 = vpop.f32.mrb[0].mxu0
    %v613 = vpop.f32.mrb[0].mxu0
    %v614 = vadd.f32 %v93, %v613
    %v615 = vpop.f32.mrb[0].mxu0
    %616 = vmatprep.mubr.bf16.mxu0 0
    %617 = vmatmul.mubr.bf16.gmra.mrb[0].mxu0 %v359
    %v618 = vpop.f32.mrb[0].mxu0
    %v619 = vadd.f32 %v93, %v618
    %v620 = vpop.f32.mrb[0].mxu0
    %v621 = vpop.f32.mrb[0].mxu0
    %v622 = vadd.f32 %v93, %v621
    %v623 = vpop.f32.mrb[0].mxu0
    %624 = vmatprep.mubr.bf16.mxu0 0
    %625 = vmatmul.mubr.bf16.gmra.mrb[0].mxu0 %v362
    %v626 = vpop.f32.mrb[0].mxu0
    %v627 = vadd.f32 %v93, %v626
    %v628 = vpop.f32.mrb[0].mxu0
    %v629 = vpop.f32.mrb[0].mxu0
    %v630 = vadd.f32 %v93, %v629
    %v631 = vpop.f32.mrb[0].mxu0
    %632 = vmatprep.mubr.bf16.mxu0 0
    %633 = vmatmul.mubr.bf16.gmra.mrb[0].mxu0 %v365
    %v634 = vpop.f32.mrb[0].mxu0
    %v635 = vadd.f32 %v93, %v634
    %v636 = vpop.f32.mrb[0].mxu0
    %v637 = vpop.f32.mrb[0].mxu0
    %v638 = vadd.f32 %v93, %v637
    %v639 = vpop.f32.mrb[0].mxu0
    %640 = vmatprep.mubr.bf16.mxu0 0
    %641 = vmatmul.mubr.bf16.gmra.mrb[0].mxu0 %v368
    %v642 = vpop.f32.mrb[0].mxu0
    %v643 = vadd.f32 %v93, %v642
    %v644 = vpop.f32.mrb[0].mxu0
    %v645 = vpop.f32.mrb[0].mxu0
    %v646 = vadd.f32 %v93, %v645
    %v647 = vpop.f32.mrb[0].mxu0
    %648 = vmatprep.mubr.bf16.mxu0 0
    %649 = vmatmul.mubr.bf16.gmra.mrb[0].mxu0 %v371
    %v650 = vpop.f32.mrb[0].mxu0
    %v651 = vadd.f32 %v93, %v650
    %v652 = vpop.f32.mrb[0].mxu0
    %v653 = vpop.f32.mrb[0].mxu0
    %v654 = vadd.f32 %v93, %v653
    %v655 = vpop.f32.mrb[0].mxu0
    %656 = vmatprep.mubr.bf16.mxu0 0
    %657 = vmatmul.mubr.bf16.gmra.mrb[0].mxu0 %v374
    %v658 = vpop.f32.mrb[0].mxu0
    %v659 = vadd.f32 %v93, %v658
    %v660 = vpop.f32.mrb[0].mxu0
    %v661 = vpop.f32.mrb[0].mxu0
    %v662 = vadd.f32 %v93, %v661
    %v663 = vpop.f32.mrb[0].mxu0
    %664 = vdwg.mxu0
    %v665 = vmax.f32 %v411, 0.0
    %v666 = vmax.f32 %v414, 0.0
    %v667 = vmax.f32 %v419, 0.0
    %v668 = vmax.f32 %v422, 0.0
    %v669 = vmax.f32 %v427, 0.0
    %v670 = vmax.f32 %v430, 0.0
    %v671 = vmax.f32 %v435, 0.0
    %v672 = vmax.f32 %v438, 0.0
    %v673 = vmax.f32 %v443, 0.0
    %v674 = vmax.f32 %v446, 0.0
    %v675 = vmax.f32 %v451, 0.0
    %v676 = vmax.f32 %v454, 0.0
    %v677 = vmax.f32 %v459, 0.0
    %v678 = vmax.f32 %v462, 0.0
    %v679 = vmax.f32 %v467, 0.0
    %v680 = vmax.f32 %v470, 0.0
    %v681 = vmax.f32 %v475, 0.0
    %v682 = vmax.f32 %v478, 0.0
    %v683 = vmax.f32 %v483, 0.0
    %v684 = vmax.f32 %v486, 0.0
    %v685 = vmax.f32 %v491, 0.0
    %v686 = vmax.f32 %v494, 0.0
    %v687 = vmax.f32 %v499, 0.0
    %v688 = vmax.f32 %v502, 0.0
    %v689 = vmax.f32 %v507, 0.0
    %v690 = vmax.f32 %v510, 0.0
    %v691 = vmax.f32 %v515, 0.0
    %v692 = vmax.f32 %v518, 0.0
    %v693 = vmax.f32 %v523, 0.0
    %v694 = vmax.f32 %v526, 0.0
    %v695 = vmax.f32 %v531, 0.0
    %v696 = vmax.f32 %v534, 0.0
    %v697 = vmax.f32 %v539, 0.0
    %v698 = vmax.f32 %v542, 0.0
    %v699 = vmax.f32 %v547, 0.0
    %v700 = vmax.f32 %v550, 0.0
    %v701 = vmax.f32 %v555, 0.0
    %v702 = vmax.f32 %v558, 0.0
    %v703 = vmax.f32 %v563, 0.0
    %v704 = vmax.f32 %v566, 0.0
    %v705 = vmax.f32 %v571, 0.0
    %v706 = vmax.f32 %v574, 0.0
    %v707 = vmax.f32 %v579, 0.0
    %v708 = vmax.f32 %v582, 0.0
    %v709 = vmax.f32 %v587, 0.0
    %v710 = vmax.f32 %v590, 0.0
    %v711 = vmax.f32 %v595, 0.0
    %v712 = vmax.f32 %v598, 0.0
    %v713 = vmax.f32 %v603, 0.0
    %v714 = vmax.f32 %v606, 0.0
    %v715 = vmax.f32 %v611, 0.0
    %v716 = vmax.f32 %v614, 0.0
    %v717 = vmax.f32 %v619, 0.0
    %v718 = vmax.f32 %v622, 0.0
    %v719 = vmax.f32 %v627, 0.0
    %v720 = vmax.f32 %v630, 0.0
    %v721 = vmax.f32 %v635, 0.0
    %v722 = vmax.f32 %v638, 0.0
    %v723 = vmax.f32 %v643, 0.0
    %v724 = vmax.f32 %v646, 0.0
    %v725 = vmax.f32 %v651, 0.0
    %v726 = vmax.f32 %v654, 0.0
    %v727 = vmax.f32 %v659, 0.0
    %v728 = vmax.f32 %v662, 0.0
    %v729 = vpack.c.bf16 %v666, %v665
    %v730 = vpack.c.bf16 %v668, %v667
    %v731 = vpack.c.bf16 %v670, %v669
    %v732 = vpack.c.bf16 %v672, %v671
    %v733 = vpack.c.bf16 %v674, %v673
    %v734 = vpack.c.bf16 %v676, %v675
    %v735 = vpack.c.bf16 %v678, %v677
    %v736 = vpack.c.bf16 %v680, %v679
    %v737 = vpack.c.bf16 %v682, %v681
    %v738 = vpack.c.bf16 %v684, %v683
    %v739 = vpack.c.bf16 %v686, %v685
    %v740 = vpack.c.bf16 %v688, %v687
    %v741 = vpack.c.bf16 %v690, %v689
    %v742 = vpack.c.bf16 %v692, %v691
    %v743 = vpack.c.bf16 %v694, %v693
    %v744 = vpack.c.bf16 %v696, %v695
    %v745 = vpack.c.bf16 %v698, %v697
    %v746 = vpack.c.bf16 %v700, %v699
    %v747 = vpack.c.bf16 %v702, %v701
    %v748 = vpack.c.bf16 %v704, %v703
    %v749 = vpack.c.bf16 %v706, %v705
    %v750 = vpack.c.bf16 %v708, %v707
    %v751 = vpack.c.bf16 %v710, %v709
    %v752 = vpack.c.bf16 %v712, %v711
    %v753 = vpack.c.bf16 %v714, %v713
    %v754 = vpack.c.bf16 %v716, %v715
    %v755 = vpack.c.bf16 %v718, %v717
    %v756 = vpack.c.bf16 %v720, %v719
    %v757 = vpack.c.bf16 %v722, %v721
    %v758 = vpack.c.bf16 %v724, %v723
    %v759 = vpack.c.bf16 %v726, %v725
    %v760 = vpack.c.bf16 %v728, %v727
    %v793 = vunpack.c.l.b16 %v729
    %v794 = vunpack.c.h.b16 %v729
    %v795 = vunpack.c.l.b16 %v730
    %v796 = vunpack.c.h.b16 %v730
    %v797 = vunpack.c.l.b16 %v731
    %v798 = vunpack.c.h.b16 %v731
    %v799 = vunpack.c.l.b16 %v732
    %v800 = vunpack.c.h.b16 %v732
    %v801 = vunpack.c.l.b16 %v733
    %v802 = vunpack.c.h.b16 %v733
    %v803 = vunpack.c.l.b16 %v734
    %v804 = vunpack.c.h.b16 %v734
    %v805 = vunpack.c.l.b16 %v735
    %v806 = vunpack.c.h.b16 %v735
    %v807 = vunpack.c.l.b16 %v736
    %v808 = vunpack.c.h.b16 %v736
    %v809 = vunpack.c.l.b16 %v737
    %v810 = vunpack.c.h.b16 %v737
    %v811 = vunpack.c.l.b16 %v738
    %v812 = vunpack.c.h.b16 %v738
    %v813 = vunpack.c.l.b16 %v739
    %v814 = vunpack.c.h.b16 %v739
    %v815 = vunpack.c.l.b16 %v740
    %v816 = vunpack.c.h.b16 %v740
    %v817 = vunpack.c.l.b16 %v741
    %v818 = vunpack.c.h.b16 %v741
    %v819 = vunpack.c.l.b16 %v742
    %v820 = vunpack.c.h.b16 %v742
    %v821 = vunpack.c.l.b16 %v743
    %v822 = vunpack.c.h.b16 %v743
    %v823 = vunpack.c.l.b16 %v744
    %v824 = vunpack.c.h.b16 %v744
    %v825 = vunpack.c.l.b16 %v745
    %v826 = vunpack.c.h.b16 %v745
    %v827 = vunpack.c.l.b16 %v746
    %v828 = vunpack.c.h.b16 %v746
    %v829 = vunpack.c.l.b16 %v747
    %v830 = vunpack.c.h.b16 %v747
    %v831 = vunpack.c.l.b16 %v748
    %v832 = vunpack.c.h.b16 %v748
    %v833 = vunpack.c.l.b16 %v749
    %v834 = vunpack.c.h.b16 %v749
    %v835 = vunpack.c.l.b16 %v750
    %v836 = vunpack.c.h.b16 %v750
    %v837 = vunpack.c.l.b16 %v751
    %v838 = vunpack.c.h.b16 %v751
    %v839 = vunpack.c.l.b16 %v752
    %v840 = vunpack.c.h.b16 %v752
    %v841 = vunpack.c.l.b16 %v753
    %v842 = vunpack.c.h.b16 %v753
    %v843 = vunpack.c.l.b16 %v754
    %v844 = vunpack.c.h.b16 %v754
    %v845 = vunpack.c.l.b16 %v755
    %v846 = vunpack.c.h.b16 %v755
    %v847 = vunpack.c.l.b16 %v756
    %v848 = vunpack.c.h.b16 %v756
    %v849 = vunpack.c.l.b16 %v757
    %v850 = vunpack.c.h.b16 %v757
    %v851 = vunpack.c.l.b16 %v758
    %v852 = vunpack.c.h.b16 %v758
    %v853 = vunpack.c.l.b16 %v759
    %v854 = vunpack.c.h.b16 %v759
    %v855 = vunpack.c.l.b16 %v760
    %v856 = vunpack.c.h.b16 %v760
    %v857 = vpack.c.b16 %v793, %v793
    %v858 = vpack.c.b16 %v794, %v794
    %v859 = vpack.c.b16 %v795, %v795
    %v860 = vpack.c.b16 %v796, %v796
    %v861 = vpack.c.b16 %v797, %v797
    %v862 = vpack.c.b16 %v798, %v798
    %v863 = vpack.c.b16 %v799, %v799
    %v864 = vpack.c.b16 %v800, %v800
    %v865 = vpack.c.b16 %v801, %v801
    %v866 = vpack.c.b16 %v802, %v802
    %v867 = vpack.c.b16 %v803, %v803
    %v868 = vpack.c.b16 %v804, %v804
    %v869 = vpack.c.b16 %v805, %v805
    %v870 = vpack.c.b16 %v806, %v806
    %v871 = vpack.c.b16 %v807, %v807
    %v872 = vpack.c.b16 %v808, %v808
    %v873 = vpack.c.b16 %v809, %v809
    %v874 = vpack.c.b16 %v810, %v810
    %v875 = vpack.c.b16 %v811, %v811
    %v876 = vpack.c.b16 %v812, %v812
    %v877 = vpack.c.b16 %v813, %v813
    %v878 = vpack.c.b16 %v814, %v814
    %v879 = vpack.c.b16 %v815, %v815
    %v880 = vpack.c.b16 %v816, %v816
    %v881 = vpack.c.b16 %v817, %v817
    %v882 = vpack.c.b16 %v818, %v818
    %v883 = vpack.c.b16 %v819, %v819
    %v884 = vpack.c.b16 %v820, %v820
    %v885 = vpack.c.b16 %v821, %v821
    %v886 = vpack.c.b16 %v822, %v822
    %v887 = vpack.c.b16 %v823, %v823
    %v888 = vpack.c.b16 %v824, %v824
    %v889 = vpack.c.b16 %v825, %v825
    %v890 = vpack.c.b16 %v826, %v826
    %v891 = vpack.c.b16 %v827, %v827
    %v892 = vpack.c.b16 %v828, %v828
    %v893 = vpack.c.b16 %v829, %v829
    %v894 = vpack.c.b16 %v830, %v830
    %v895 = vpack.c.b16 %v831, %v831
    %v896 = vpack.c.b16 %v832, %v832
    %v897 = vpack.c.b16 %v833, %v833
    %v898 = vpack.c.b16 %v834, %v834
    %v899 = vpack.c.b16 %v835, %v835
    %v900 = vpack.c.b16 %v836, %v836
    %v901 = vpack.c.b16 %v837, %v837
    %v902 = vpack.c.b16 %v838, %v838
    %v903 = vpack.c.b16 %v839, %v839
    %v904 = vpack.c.b16 %v840, %v840
    %v905 = vpack.c.b16 %v841, %v841
    %v906 = vpack.c.b16 %v842, %v842
    %v907 = vpack.c.b16 %v843, %v843
    %v908 = vpack.c.b16 %v844, %v844
    %v909 = vpack.c.b16 %v845, %v845
    %v910 = vpack.c.b16 %v846, %v846
    %v911 = vpack.c.b16 %v847, %v847
    %v912 = vpack.c.b16 %v848, %v848
    %v913 = vpack.c.b16 %v849, %v849
    %v914 = vpack.c.b16 %v850, %v850
    %v915 = vpack.c.b16 %v851, %v851
    %v916 = vpack.c.b16 %v852, %v852
    %v917 = vpack.c.b16 %v853, %v853
    %v918 = vpack.c.b16 %v854, %v854
    %v919 = vpack.c.b16 %v855, %v855
    %v920 = vpack.c.b16 %v856, %v856
    %985 = vst [vmem:[#allocation2] sm:$0xf] %v857
    %986 = vst [vmem:[#allocation2 + $0x4] sm:$0xf] %v858
    %987 = vst [vmem:[#allocation2 + $0x8] sm:$0xf] %v859
    %988 = vst [vmem:[#allocation2 + $0xc] sm:$0xf] %v860
    %989 = vst [vmem:[#allocation2 + $0x10] sm:$0xf] %v861
    %990 = vst [vmem:[#allocation2 + $0x14] sm:$0xf] %v862
    %991 = vst [vmem:[#allocation2 + $0x18] sm:$0xf] %v863
    %992 = vst [vmem:[#allocation2 + $0x1c] sm:$0xf] %v864
    %993 = vst [vmem:[#allocation2 + $0x20] sm:$0xf] %v865
    %994 = vst [vmem:[#allocation2 + $0x24] sm:$0xf] %v866
    %995 = vst [vmem:[#allocation2 + $0x28] sm:$0xf] %v867
    %996 = vst [vmem:[#allocation2 + $0x2c] sm:$0xf] %v868
    %997 = vst [vmem:[#allocation2 + $0x30] sm:$0xf] %v869
    %998 = vst [vmem:[#allocation2 + $0x34] sm:$0xf] %v870
    %999 = vst [vmem:[#allocation2 + $0x38] sm:$0xf] %v871
    %1000 = vst [vmem:[#allocation2 + $0x3c] sm:$0xf] %v872
    %1001 = vst [vmem:[#allocation2 + $0x40] sm:$0xf] %v873
    %1002 = vst [vmem:[#allocation2 + $0x44] sm:$0xf] %v874
    %1003 = vst [vmem:[#allocation2 + $0x48] sm:$0xf] %v875
    %1004 = vst [vmem:[#allocation2 + $0x4c] sm:$0xf] %v876
    %1005 = vst [vmem:[#allocation2 + $0x50] sm:$0xf] %v877
    %1006 = vst [vmem:[#allocation2 + $0x54] sm:$0xf] %v878
    %1007 = vst [vmem:[#allocation2 + $0x58] sm:$0xf] %v879
    %1008 = vst [vmem:[#allocation2 + $0x5c] sm:$0xf] %v880
    %1009 = vst [vmem:[#allocation2 + $0x60] sm:$0xf] %v881
    %1010 = vst [vmem:[#allocation2 + $0x64] sm:$0xf] %v882
    %1011 = vst [vmem:[#allocation2 + $0x68] sm:$0xf] %v883
    %1012 = vst [vmem:[#allocation2 + $0x6c] sm:$0xf] %v884
    %1013 = vst [vmem:[#allocation2 + $0x70] sm:$0xf] %v885
    %1014 = vst [vmem:[#allocation2 + $0x74] sm:$0xf] %v886
    %1015 = vst [vmem:[#allocation2 + $0x78] sm:$0xf] %v887
    %1016 = vst [vmem:[#allocation2 + $0x7c] sm:$0xf] %v888
    %1017 = vst [vmem:[#allocation2 + $0x80] sm:$0xf] %v889
    %1018 = vst [vmem:[#allocation2 + $0x84] sm:$0xf] %v890
    %1019 = vst [vmem:[#allocation2 + $0x88] sm:$0xf] %v891
    %1020 = vst [vmem:[#allocation2 + $0x8c] sm:$0xf] %v892
    %1021 = vst [vmem:[#allocation2 + $0x90] sm:$0xf] %v893
    %1022 = vst [vmem:[#allocation2 + $0x94] sm:$0xf] %v894
    %1023 = vst [vmem:[#allocation2 + $0x98] sm:$0xf] %v895
    %1024 = vst [vmem:[#allocation2 + $0x9c] sm:$0xf] %v896
    %1025 = vst [vmem:[#allocation2 + $0xa0] sm:$0xf] %v897
    %1026 = vst [vmem:[#allocation2 + $0xa4] sm:$0xf] %v898
    %1027 = vst [vmem:[#allocation2 + $0xa8] sm:$0xf] %v899
    %1028 = vst [vmem:[#allocation2 + $0xac] sm:$0xf] %v900
    %1029 = vst [vmem:[#allocation2 + $0xb0] sm:$0xf] %v901
    %1030 = vst [vmem:[#allocation2 + $0xb4] sm:$0xf] %v902
    %1031 = vst [vmem:[#allocation2 + $0xb8] sm:$0xf] %v903
    %1032 = vst [vmem:[#allocation2 + $0xbc] sm:$0xf] %v904
    %1033 = vst [vmem:[#allocation2 + $0xc0] sm:$0xf] %v905
    %1034 = vst [vmem:[#allocation2 + $0xc4] sm:$0xf] %v906
    %1035 = vst [vmem:[#allocation2 + $0xc8] sm:$0xf] %v907
    %1036 = vst [vmem:[#allocation2 + $0xcc] sm:$0xf] %v908
    %1037 = vst [vmem:[#allocation2 + $0xd0] sm:$0xf] %v909
    %1038 = vst [vmem:[#allocation2 + $0xd4] sm:$0xf] %v910
    %1039 = vst [vmem:[#allocation2 + $0xd8] sm:$0xf] %v911
    %1040 = vst [vmem:[#allocation2 + $0xdc] sm:$0xf] %v912
    %1041 = vst [vmem:[#allocation2 + $0xe0] sm:$0xf] %v913
    %1042 = vst [vmem:[#allocation2 + $0xe4] sm:$0xf] %v914
    %1043 = vst [vmem:[#allocation2 + $0xe8] sm:$0xf] %v915
    %1044 = vst [vmem:[#allocation2 + $0xec] sm:$0xf] %v916
    %1045 = vst [vmem:[#allocation2 + $0xf0] sm:$0xf] %v917
    %1046 = vst [vmem:[#allocation2 + $0xf4] sm:$0xf] %v918
    %1047 = vst [vmem:[#allocation2 + $0xf8] sm:$0xf] %v919
    %1048 = vst [vmem:[#allocation2 + $0xfc] sm:$0xf] %v920
    // Predicated region
    $region14: #{tpu_custom_call.1} parent=1 // pred_check
      _
    $region15: #{tpu_custom_call.1} parent=1 // pred_check_branch
      %1050 = sbr.rel (0) target = $region17
    $region16: #{tpu_custom_call.1} parent=1 // pred_region
      %s1052 = ssub.s32 4096, 4096
      %1053 = vsyncadd [#allocation3], %s1052
      %s1054 = sshll.u32 [#allocation2], 4
      %s1055 = int_to_ptr.vmem [resolvable:$true] %s1054
      %1060 = dma.vmem_to_hbm [thread:$0]  %s1055, 4096, %s3, [#allocation3], 64, 64, 4
    $region17: #{tpu_custom_call.1} parent=1 // pred_fallthru
      _
    // Predicated region
    $region18: #{tpu_custom_call.1} parent=1 // pred_check
      _
    $region19: #{tpu_custom_call.1} parent=1 // pred_check_branch
      %1062 = sbr.rel (0) target = $region21
    $region20: #{tpu_custom_call.1} parent=1 // pred_region
      %1063 = dma.done [#allocation3], 4096
    $region21: #{tpu_custom_call.1} parent=1 // pred_fallthru
      _
    %1064 = vsyncpa [#allocation3], 1

</llo_original>
